<compile_context>
chip_gen: v7x
topology: tpu7x:2x2x1
jax: 0.10.0
libtpu: 0.0.40
codegen_flags: <defaults>
</compile_context>

<pallas_src>
import math

import jax
import jax.numpy as jnp
import numpy as np
from jax.experimental import pallas as pl
from jax.experimental.pallas import tpu as pltpu


def _round_up(x, m):
    return ((x + m - 1) // m) * m


def _round_down(x, m):
    return (x // m) * m


def _pos_embed_kernel(coords_ref, sel_ref, fp_ref, out_ref):
    """coords_ref: [bn, 3r] packed voxel coords (f32 or int32)
    sel_ref:    [3r, W] bf16 0/1 lane-selection matrix (lane -> source column)
    fp_ref:     [2, W]  f32: row0 = 1/inv_freq per lane, row1 = phase (0 or pi/2)
    out_ref:    [bn, W] target dtype (W = r * feat_dim, lane-dense)."""
    x = coords_ref[...].astype(jnp.float32)                      # [bn, 3r]
    # Exact f32 -> bf16 x 3 split: hi/mid/lo are each bf16-representable, so the
    # bf16 MXU selection matmuls (0/1 matrix, f32 accumulation) reconstruct the
    # coordinate exactly for any magnitude.
    hi = x.astype(jnp.bfloat16)
    rem = x - hi.astype(jnp.float32)
    mid = rem.astype(jnp.bfloat16)
    lo = (rem - mid.astype(jnp.float32)).astype(jnp.bfloat16)
    sel = sel_ref[...]                                           # [3r, W] bf16
    coord = jnp.dot(hi, sel, preferred_element_type=jnp.float32)
    coord = coord + jnp.dot(mid, sel, preferred_element_type=jnp.float32)
    coord = coord + jnp.dot(lo, sel, preferred_element_type=jnp.float32)
    # even lanes: sin(c * rinv); odd lanes: sin(c * rinv + pi/2) == cos(c * rinv)
    arg = coord * fp_ref[0:1, :] + fp_ref[1:2, :]
    out_ref[...] = jnp.sin(arg).astype(out_ref.dtype)


def positional_embedding(coords, feat_dim, pos_temperature, dtype=jnp.float32,
                         block_points=32768, vmem_budget_bytes=24 * 1024 * 1024):
    """coords: [N, 3] voxel coordinates -> [N, feat_dim] positional embedding."""
    if coords.ndim != 2 or coords.shape[1] != 3:
        raise ValueError(f"coords must be [N, 3], got {coords.shape}")
    N = int(coords.shape[0])
    out_dtype = np.dtype(dtype)
    L = int(math.ceil(feat_dim / 6.0) * 2)                    # per-axis pos_length

    # ---- row packing factor r: make the kernel lane width a multiple of 128 ----
    r = 128 // math.gcd(feat_dim, 128)
    if r * feat_dim > 1024:                 # cap the block lane width at 8 vregs
        r = max(1, 1024 // feat_dim)
    W = r * feat_dim
    n_pad = -(-N // r) * r
    M = n_pad // r

    # ---- trace-time lane tables (numpy) -> small device-constant inputs ----
    lane = np.arange(W)
    subrow = lane // feat_dim               # which of the r packed points
    col = lane % feat_dim                   # column inside one point's embedding
    axis = col // L                         # 0:x 1:y 2:z (truncation built in)
    j = col % L                             # frequency index within one axis
    sel_np = np.zeros((3 * r, W), np.float32)
    sel_np[3 * subrow + axis, lane] = 1.0   # 0/1 selection, exact in bf16
    jf = j.astype(np.float32)
    inv_freq = np.float32(pos_temperature) ** (
        np.float32(2.0) * np.floor(jf / 2.0) / np.float32(L))
    rinv = np.float32(1.0) / inv_freq
    phase = (jf % np.float32(2.0)) * np.float32(math.pi / 2.0)
    sel = jnp.asarray(sel_np, dtype=jnp.bfloat16)
    fp = jnp.asarray(np.stack([rinv, phase], axis=0))            # [2, W] f32

    # ---- coords: keep f32/int32 as-is (cast happens on the VPU in-kernel) ----
    if coords.dtype not in (jnp.float32, jnp.int32):
        coords = coords.astype(jnp.float32)
    if n_pad != N:
        coords = jnp.concatenate(
            [coords, jnp.zeros((n_pad - N, 3), coords.dtype)], axis=0)
    coords_packed = coords.reshape(M, 3 * r)

    # ---- block size: as large as VMEM safely allows on every TPU generation ----
    row_align = {4: 8, 2: 16, 1: 32}.get(out_dtype.itemsize, 8)
    lanes_in = _round_up(3 * r, 128)
    lanes_out = _round_up(W, 128)
    temps = 8   # allowance for Mosaic's full-width f32 temporaries (dot/arg/sin)
    bytes_per_row = (2 * lanes_in * 4 + 2 * lanes_out * out_dtype.itemsize
                     + temps * lanes_out * 4)
    const_bytes = 2 * (_round_up(3 * r, 16) * lanes_out * 2 + 8 * lanes_out * 4)
    cap_rows = max(row_align,
                   _round_down((vmem_budget_bytes - const_bytes) // bytes_per_row,
                               row_align))
    bn = max(row_align, min(max(1, block_points // r), cap_rows))
    if M >= 8 * 1024:
        # keep >= ~8 grid steps on big inputs (pipelining + v7x's 2 TensorCores)
        bn = min(bn, max(1024, _round_up(-(-M // 8), row_align)))
    if bn >= M:
        bn = M                  # full-extent block (always legal)
    else:
        bn = _round_down(bn, row_align)

    grid = (pl.cdiv(M, bn),)
    out_packed = pl.pallas_call(
        _pos_embed_kernel,
        out_shape=jax.ShapeDtypeStruct((M, W), out_dtype),
        grid_spec=pltpu.PrefetchScalarGridSpec(
            num_scalar_prefetch=0,
            grid=grid,
            in_specs=[
                pl.BlockSpec((bn, 3 * r), lambda i: (i, 0)),
                pl.BlockSpec((3 * r, W), lambda i: (0, 0)),
                pl.BlockSpec((2, W), lambda i: (0, 0)),
            ],
            out_specs=pl.BlockSpec((bn, W), lambda i: (i, 0)),
        ),
        compiler_params=pltpu.CompilerParams(
            dimension_semantics=("parallel",),
            vmem_limit_bytes=32 * 1024 * 1024),
    )(coords_packed, sel, fp)

    # TODO(synk): consumers that accept the row-packed [M, r*feat_dim] layout (or a
    # 128-multiple feat_dim, where r == 1) avoid this wrapper-side relayout entirely.
    pe = out_packed.reshape(n_pad, feat_dim)
    if n_pad != N:
        pe = pe[:N]
    return pe


def _reference(coords, feat_dim, pos_temperature):
    """Pure numpy reference replicating the PyTorch forward."""
    coords = np.asarray(coords, np.float32)
    pos_length = int(np.ceil(feat_dim / 6.0) * 2)
    i = np.arange(pos_length, dtype=np.float32)
    inv_freq = np.float32(pos_temperature) ** (2 * (i // 2) / pos_length)
    outs = []
    for a in range(3):
        arg = coords[:, a][:, None] / inv_freq[None, :]
        pe = np.empty_like(arg)
        pe[:, 0::2] = np.sin(arg[:, 0::2])
        pe[:, 1::2] = np.cos(arg[:, 1::2])
        outs.append(pe)
    pe = np.concatenate(outs, axis=-1)
    if pe.shape[1] > feat_dim:
        pe = pe[:, :feat_dim]
    return pe


if __name__ == "__main__":
    pos_temperature = 10000
    key = jax.random.PRNGKey(0)

    # coords up to ~1000 exercise the exact bf16x3 selection path (a plain bf16
    # matmul of raw coords would silently lose bits above 256).
    coords = jax.random.randint(key, (256, 3), minval=0, maxval=1000).astype(jnp.float32)

    # f32 path: feat_dim=32 (r=4 -> 128 lanes), 20 (r=32 -> 640 lanes, exercises
    # truncation to feat_dim), 128 (r=1, already lane-dense, no repack).
    for feat_dim in (32, 20, 128):
        pe = jax.block_until_ready(
            positional_embedding(coords, feat_dim, pos_temperature, dtype=jnp.float32))
        assert pe.shape == (256, feat_dim), pe.shape
        ref = _reference(np.asarray(coords), feat_dim, pos_temperature)
        np.testing.assert_allclose(np.asarray(pe), ref, rtol=2e-3, atol=2e-3)

    # N not divisible by the packing factor (exercises pad + tail slice).
    coords_odd = coords[:250]
    pe_odd = jax.block_until_ready(
        positional_embedding(coords_odd, 32, pos_temperature, dtype=jnp.float32))
    assert pe_odd.shape == (250, 32), pe_odd.shape
    np.testing.assert_allclose(
        np.asarray(pe_odd),
        _reference(np.asarray(coords_odd), 32, pos_temperature),
        rtol=2e-3, atol=2e-3)

    # bf16 output path (cast inside the kernel -> halved HBM write traffic).
    pe16 = jax.block_until_ready(
        positional_embedding(coords, 32, pos_temperature, dtype=jnp.bfloat16))
    assert pe16.shape == (256, 32) and pe16.dtype == jnp.bfloat16
    np.testing.assert_allclose(
        np.asarray(pe16, dtype=np.float32),
        _reference(np.asarray(coords), 32, pos_temperature),
        rtol=2e-2, atol=2e-2)

    print("KERNEL_OK")
</pallas_src>

<mosaic_0001>
module attributes {stable_mosaic.version = 11 : i64} {
  func.func @_pos_embed_kernel(%arg0: i32, %arg1: memref<64x12xf32, #tpu.memory_space<vmem>>, %arg2: memref<12x128xbf16, #tpu.memory_space<vmem>>, %arg3: memref<2x128xf32, #tpu.memory_space<vmem>>, %arg4: memref<64x128xf32, #tpu.memory_space<vmem>>) attributes {dimension_semantics = [#tpu.dimension_semantics<parallel>], iteration_bounds = array<i64: 1>, scalar_prefetch = 0 : i64, scratch_operands = 0 : i64, tpu.core_type = #tpu.core_type<tc>, window_params = [{transform_indices = @transform_0, window_bounds = array<i64: 64, 12>}, {pipeline_mode = #tpu.pipeline_mode<synchronous>, transform_indices = @transform_1, window_bounds = array<i64: 12, 128>}, {pipeline_mode = #tpu.pipeline_mode<synchronous>, transform_indices = @transform_2, window_bounds = array<i64: 2, 128>}, {transform_indices = @transform_3, window_bounds = array<i64: 64, 128>}]} {
    %c0 = arith.constant 0 : index
    %c0_0 = arith.constant 0 : index
    %0 = vector.load %arg1[%c0, %c0_0] : memref<64x12xf32, #tpu.memory_space<vmem>>, vector<64x12xf32>
    %1 = arith.truncf %0 : vector<64x12xf32> to vector<64x12xbf16>
    %2 = arith.extf %1 : vector<64x12xbf16> to vector<64x12xf32>
    %3 = arith.subf %0, %2 : vector<64x12xf32>
    %4 = arith.truncf %3 : vector<64x12xf32> to vector<64x12xbf16>
    %5 = arith.extf %4 : vector<64x12xbf16> to vector<64x12xf32>
    %6 = arith.subf %3, %5 : vector<64x12xf32>
    %7 = arith.truncf %6 : vector<64x12xf32> to vector<64x12xbf16>
    %c0_1 = arith.constant 0 : index
    %c0_2 = arith.constant 0 : index
    %8 = vector.load %arg2[%c0_1, %c0_2] : memref<12x128xbf16, #tpu.memory_space<vmem>>, vector<12x128xbf16>
    %cst = arith.constant dense<0.000000e+00> : vector<64x128xf32>
    %9 = tpu.matmul %1, %8, %cst {dimension_numbers = #tpu.dot_dimension_numbers<[1], [0], [0], [1], [0, 0, 1, 1], [], []>} : vector<64x12xbf16>, vector<12x128xbf16>, vector<64x128xf32> -> vector<64x128xf32>
    %cst_3 = arith.constant dense<0.000000e+00> : vector<64x128xf32>
    %10 = tpu.matmul %4, %8, %cst_3 {dimension_numbers = #tpu.dot_dimension_numbers<[1], [0], [0], [1], [0, 0, 1, 1], [], []>} : vector<64x12xbf16>, vector<12x128xbf16>, vector<64x128xf32> -> vector<64x128xf32>
    %11 = arith.addf %9, %10 : vector<64x128xf32>
    %cst_4 = arith.constant dense<0.000000e+00> : vector<64x128xf32>
    %12 = tpu.matmul %7, %8, %cst_4 {dimension_numbers = #tpu.dot_dimension_numbers<[1], [0], [0], [1], [0, 0, 1, 1], [], []>} : vector<64x12xbf16>, vector<12x128xbf16>, vector<64x128xf32> -> vector<64x128xf32>
    %13 = arith.addf %11, %12 : vector<64x128xf32>
    %c0_5 = arith.constant 0 : index
    %c0_6 = arith.constant 0 : index
    %14 = vector.load %arg3[%c0_5, %c0_6] : memref<2x128xf32, #tpu.memory_space<vmem>>, vector<1x128xf32>
    %15 = vector.broadcast %14 : vector<1x128xf32> to vector<64x128xf32>
    %16 = arith.mulf %13, %15 : vector<64x128xf32>
    %c1 = arith.constant 1 : index
    %c0_7 = arith.constant 0 : index
    %17 = vector.load %arg3[%c1, %c0_7] : memref<2x128xf32, #tpu.memory_space<vmem>>, vector<1x128xf32>
    %18 = vector.broadcast %17 : vector<1x128xf32> to vector<64x128xf32>
    %19 = arith.addf %16, %18 : vector<64x128xf32>
    %20 = math.sin %19 : vector<64x128xf32>
    %c0_8 = arith.constant 0 : index
    %c0_9 = arith.constant 0 : index
    %21 = vector.load %arg4[%c0_8, %c0_9] : memref<64x128xf32, #tpu.memory_space<vmem>>, vector<64x128xf32>
    tpu.vector_store %arg4[%c0_8, %c0_9], %20 {strides = array<i32>} : memref<64x128xf32, #tpu.memory_space<vmem>>, vector<64x128xf32>,
    return
  }
  func.func @transform_0(%arg0: i32) -> (i32, i32) {
    %c0_i32 = arith.constant 0 : i32
    %c0_i32_0 = arith.constant 0 : i32
    return %arg0, %c0_i32 : i32, i32
  }
  func.func @transform_1(%arg0: i32) -> (i32, i32) {
    %c0_i32 = arith.constant 0 : i32
    %c0_i32_0 = arith.constant 0 : i32
    %c0_i32_1 = arith.constant 0 : i32
    return %c0_i32, %c0_i32_0 : i32, i32
  }
  func.func @transform_2(%arg0: i32) -> (i32, i32) {
    %c0_i32 = arith.constant 0 : i32
    %c0_i32_0 = arith.constant 0 : i32
    %c0_i32_1 = arith.constant 0 : i32
    return %c0_i32, %c0_i32_0 : i32, i32
  }
  func.func @transform_3(%arg0: i32) -> (i32, i32) {
    %c0_i32 = arith.constant 0 : i32
    %c0_i32_0 = arith.constant 0 : i32
    return %arg0, %c0_i32 : i32, i32
  }
}

</mosaic_0001>

<llo_original>
// kernel: tpu_custom_call.1
$region0: #{tpu_custom_call.1}
  #allocation0 [shape = 'u32[]', space=smem, size = 0x4, offset = 0x4, fixed_abs, tag = 'smem constant byte address 0x4 - core index']
  #allocation1 [shape = 'u32[144,128]{1,0:T(1,128)}', space=vmem, size = 0x12000, scoped, tag = 'internal scratch']
  %s0 = inlined_call_operand.vmem [shape: f32[64,12], index: 0, kind: input, shape index: {}]
  %s1 = inlined_call_operand.vmem [shape: bf16[12,128], index: 1, kind: input, shape index: {}]
  %s2 = inlined_call_operand.vmem [shape: f32[2,128], index: 2, kind: input, shape index: {}]
  %s3 = inlined_call_operand.hbm [shape: f32[64,128], index: 3, kind: output, shape index: {}]
  %s4 = sld [smem:[#allocation0]]
  $region22: #{tpu_custom_call.1} parent=0
    _
  %s6 = ssub.s32 1, %s4
  %s7 = scalar_select 0, %s6, %s4
  $region1: #{tpu_custom_call.1} parent=0
    #allocation2 [shape = 'u8[32768]{0}', space=vmem, size = 0x8000, scoped, tag = 'output window, operand 0, single buffered']
    #allocation3 [shape = 's32[1]{0}', space=sflag, size = 0x4, scoped, tag = 'scoped memory for tpu_custom_call.1']
    %8 = vsyncpa [#allocation3], 0
    // Predicated region
    $region2: #{tpu_custom_call.1} parent=1 // pred_check
      _
    $region3: #{tpu_custom_call.1} parent=1 // pred_check_branch
      %10 = sbr.rel (0) target = $region5
    $region4: #{tpu_custom_call.1} parent=1 // pred_region
      _
    $region5: #{tpu_custom_call.1} parent=1 // pred_fallthru
      _
    // Predicated region
    $region6: #{tpu_custom_call.1} parent=1 // pred_check
      _
    $region7: #{tpu_custom_call.1} parent=1 // pred_check_branch
      %12 = sbr.rel (0) target = $region9
    $region8: #{tpu_custom_call.1} parent=1 // pred_region
      _
    $region9: #{tpu_custom_call.1} parent=1 // pred_fallthru
      _
    // Predicated region
    $region10: #{tpu_custom_call.1} parent=1 // pred_check
      _
    $region11: #{tpu_custom_call.1} parent=1 // pred_check_branch
      %14 = sbr.rel (0) target = $region13
    $region12: #{tpu_custom_call.1} parent=1 // pred_region
      _
    $region13: #{tpu_custom_call.1} parent=1 // pred_fallthru
      _
    %v16 = vld [vmem:[%s0] sm:$0xff]
    %v17 = vld [vmem:[%s0 + $0x8] sm:$0xff]
    %v18 = vld [vmem:[%s0 + $0x10] sm:$0xff]
    %v19 = vld [vmem:[%s0 + $0x18] sm:$0xff]
    %v20 = vld [vmem:[%s0 + $0x20] sm:$0xff]
    %v21 = vld [vmem:[%s0 + $0x28] sm:$0xff]
    %v22 = vld [vmem:[%s0 + $0x30] sm:$0xff]
    %v23 = vld [vmem:[%s0 + $0x38] sm:$0xff]
    %v24 = vpack.c.bf16 %v17, %v16
    %v25 = vpack.c.bf16 %v19, %v18
    %v26 = vpack.c.bf16 %v21, %v20
    %v27 = vpack.c.bf16 %v23, %v22
    %v28 = vunpack.c.l.bf16 %v24
    %v29 = vunpack.c.h.bf16 %v24
    %v30 = vunpack.c.l.bf16 %v25
    %v31 = vunpack.c.h.bf16 %v25
    %v32 = vunpack.c.l.bf16 %v26
    %v33 = vunpack.c.h.bf16 %v26
    %v34 = vunpack.c.l.bf16 %v27
    %v35 = vunpack.c.h.bf16 %v27
    %v36 = vsub.f32 %v16, %v28
    %v37 = vsub.f32 %v17, %v29
    %v38 = vsub.f32 %v18, %v30
    %v39 = vsub.f32 %v19, %v31
    %v40 = vsub.f32 %v20, %v32
    %v41 = vsub.f32 %v21, %v33
    %v42 = vsub.f32 %v22, %v34
    %v43 = vsub.f32 %v23, %v35
    %v44 = vpack.c.bf16 %v37, %v36
    %v45 = vpack.c.bf16 %v39, %v38
    %v46 = vpack.c.bf16 %v41, %v40
    %v47 = vpack.c.bf16 %v43, %v42
    %v48 = vunpack.c.l.bf16 %v44
    %v49 = vunpack.c.h.bf16 %v44
    %v50 = vunpack.c.l.bf16 %v45
    %v51 = vunpack.c.h.bf16 %v45
    %v52 = vunpack.c.l.bf16 %v46
    %v53 = vunpack.c.h.bf16 %v46
    %v54 = vunpack.c.l.bf16 %v47
    %v55 = vunpack.c.h.bf16 %v47
    %v56 = vsub.f32 %v36, %v48
    %v57 = vsub.f32 %v37, %v49
    %v58 = vsub.f32 %v38, %v50
    %v59 = vsub.f32 %v39, %v51
    %v60 = vsub.f32 %v40, %v52
    %v61 = vsub.f32 %v41, %v53
    %v62 = vsub.f32 %v42, %v54
    %v63 = vsub.f32 %v43, %v55
    %v64 = vpack.c.bf16 %v57, %v56
    %v65 = vpack.c.bf16 %v59, %v58
    %v66 = vpack.c.bf16 %v61, %v60
    %v67 = vpack.c.bf16 %v63, %v62
    %v68 = vld [vmem:[%s1] sm:$0xf]
    %v69 = vld [vmem:[%s1 + $0x4] sm:$0x3]
    %v72 = vunpack.c.l.b16 %v68
    %v73 = vunpack.c.l.b16 %v69
    %v74 = vpack.c.b16 %v73, %v72
    %vm75 = vcmask 97280
    %v77 = vsel %vm75, %v44, 0
    %v80 = vsel %vm75, %v45, 0
    %v83 = vsel %vm75, %v46, 0
    %v86 = vsel %vm75, %v47, 0
    %vm88 = vcmask 1045504
    %v90 = vsel %vm88, %v74, 0
    %92 = vmatprep.subr.bf16.mxu0 0
    %93 = vmatpush1.bf16.msra.mxu0 %v90
    %94 = vmatprep.subr.bf16.mxu0 0
    %95 = vmatpush1.bf16.msra.mxu0 0
    %96 = vmatprep.subr.bf16.mxu0 0
    %97 = vmatpush1.bf16.msra.mxu0 0
    %98 = vmatprep.subr.bf16.mxu0 0
    %99 = vmatpush1.bf16.msra.mxu0 0
    %100 = vmatprep.subr.bf16.mxu0 0
    %101 = vmatpush1.bf16.msra.mxu0 0
    %102 = vmatprep.subr.bf16.mxu0 0
    %103 = vmatpush1.bf16.msra.mxu0 0
    %104 = vmatprep.subr.bf16.mxu0 0
    %105 = vmatpush1.bf16.msra.mxu0 0
    %106 = vmatprep.subr.bf16.mxu0 0
    %107 = vmatpush1.bf16.msra.mxu0 0
    %108 = vmatprep.subr.bf16.mxu0 0
    %109 = vmatpush1.bf16.msra.mxu0 0
    %110 = vmatprep.subr.bf16.mxu0 0
    %111 = vmatpush1.bf16.msra.mxu0 0
    %112 = vmatprep.subr.bf16.mxu0 0
    %113 = vmatpush1.bf16.msra.mxu0 0
    %114 = vmatprep.subr.bf16.mxu0 0
    %115 = vmatpush1.bf16.msra.mxu0 0
    %116 = vmatprep.subr.bf16.mxu0 0
    %117 = vmatpush1.bf16.msra.mxu0 0
    %118 = vmatprep.subr.bf16.mxu0 0
    %119 = vmatpush1.bf16.msra.mxu0 0
    %120 = vmatprep.subr.bf16.mxu0 0
    %121 = vmatpush1.bf16.msra.mxu0 0
    %122 = vmatprep.subr.bf16.mxu0 0
    %123 = vmatpush1.bf16.msra.mxu0 0
    %124 = vmatprep.mubr.bf16.mxu0 0
    %125 = vmatmul.mubr.bf16.gmra.mrb[0].mxu0 %v77
    %v126 = vpop.f32.mrb[0].mxu0
    %v127 = vadd.f32 0.0, %v126
    %v128 = vpop.f32.mrb[0].mxu0
    %v129 = vpop.f32.mrb[0].mxu0
    %v130 = vadd.f32 0.0, %v129
    %v131 = vpop.f32.mrb[0].mxu0
    %132 = vmatprep.mubr.bf16.mxu0 0
    %133 = vmatmul.mubr.bf16.gmra.mrb[0].mxu0 %v80
    %v134 = vpop.f32.mrb[0].mxu0
    %v135 = vadd.f32 0.0, %v134
    %v136 = vpop.f32.mrb[0].mxu0
    %v137 = vpop.f32.mrb[0].mxu0
    %v138 = vadd.f32 0.0, %v137
    %v139 = vpop.f32.mrb[0].mxu0
    %140 = vmatprep.mubr.bf16.mxu0 0
    %141 = vmatmul.mubr.bf16.gmra.mrb[0].mxu0 %v83
    %v142 = vpop.f32.mrb[0].mxu0
    %v143 = vadd.f32 0.0, %v142
    %v144 = vpop.f32.mrb[0].mxu0
    %v145 = vpop.f32.mrb[0].mxu0
    %v146 = vadd.f32 0.0, %v145
    %v147 = vpop.f32.mrb[0].mxu0
    %148 = vmatprep.mubr.bf16.mxu0 0
    %149 = vmatmul.mubr.bf16.gmra.mrb[0].mxu0 %v86
    %v150 = vpop.f32.mrb[0].mxu0
    %v151 = vadd.f32 0.0, %v150
    %v152 = vpop.f32.mrb[0].mxu0
    %v153 = vpop.f32.mrb[0].mxu0
    %v154 = vadd.f32 0.0, %v153
    %v155 = vpop.f32.mrb[0].mxu0
    %156 = vdwg.mxu0
    %v158 = vsel %vm75, %v24, 0
    %v161 = vsel %vm75, %v25, 0
    %v164 = vsel %vm75, %v26, 0
    %v167 = vsel %vm75, %v27, 0
    %169 = vmatprep.subr.bf16.mxu0 0
    %170 = vmatpush1.bf16.msra.mxu0 %v90
    %171 = vmatprep.subr.bf16.mxu0 0
    %172 = vmatpush1.bf16.msra.mxu0 0
    %173 = vmatprep.subr.bf16.mxu0 0
    %174 = vmatpush1.bf16.msra.mxu0 0
    %175 = vmatprep.subr.bf16.mxu0 0
    %176 = vmatpush1.bf16.msra.mxu0 0
    %177 = vmatprep.subr.bf16.mxu0 0
    %178 = vmatpush1.bf16.msra.mxu0 0
    %179 = vmatprep.subr.bf16.mxu0 0
    %180 = vmatpush1.bf16.msra.mxu0 0
    %181 = vmatprep.subr.bf16.mxu0 0
    %182 = vmatpush1.bf16.msra.mxu0 0
    %183 = vmatprep.subr.bf16.mxu0 0
    %184 = vmatpush1.bf16.msra.mxu0 0
    %185 = vmatprep.subr.bf16.mxu0 0
    %186 = vmatpush1.bf16.msra.mxu0 0
    %187 = vmatprep.subr.bf16.mxu0 0
    %188 = vmatpush1.bf16.msra.mxu0 0
    %189 = vmatprep.subr.bf16.mxu0 0
    %190 = vmatpush1.bf16.msra.mxu0 0
    %191 = vmatprep.subr.bf16.mxu0 0
    %192 = vmatpush1.bf16.msra.mxu0 0
    %193 = vmatprep.subr.bf16.mxu0 0
    %194 = vmatpush1.bf16.msra.mxu0 0
    %195 = vmatprep.subr.bf16.mxu0 0
    %196 = vmatpush1.bf16.msra.mxu0 0
    %197 = vmatprep.subr.bf16.mxu0 0
    %198 = vmatpush1.bf16.msra.mxu0 0
    %199 = vmatprep.subr.bf16.mxu0 0
    %200 = vmatpush1.bf16.msra.mxu0 0
    %201 = vmatprep.mubr.bf16.mxu0 0
    %202 = vmatmul.mubr.bf16.gmra.mrb[0].mxu0 %v158
    %v203 = vpop.f32.mrb[0].mxu0
    %v204 = vadd.f32 %v127, %v203
    %v205 = vpop.f32.mrb[0].mxu0
    %v206 = vpop.f32.mrb[0].mxu0
    %v207 = vadd.f32 %v130, %v206
    %v208 = vpop.f32.mrb[0].mxu0
    %209 = vmatprep.mubr.bf16.mxu0 0
    %210 = vmatmul.mubr.bf16.gmra.mrb[0].mxu0 %v161
    %v211 = vpop.f32.mrb[0].mxu0
    %v212 = vadd.f32 %v135, %v211
    %v213 = vpop.f32.mrb[0].mxu0
    %v214 = vpop.f32.mrb[0].mxu0
    %v215 = vadd.f32 %v138, %v214
    %v216 = vpop.f32.mrb[0].mxu0
    %217 = vmatprep.mubr.bf16.mxu0 0
    %218 = vmatmul.mubr.bf16.gmra.mrb[0].mxu0 %v164
    %v219 = vpop.f32.mrb[0].mxu0
    %v220 = vadd.f32 %v143, %v219
    %v221 = vpop.f32.mrb[0].mxu0
    %v222 = vpop.f32.mrb[0].mxu0
    %v223 = vadd.f32 %v146, %v222
    %v224 = vpop.f32.mrb[0].mxu0
    %225 = vmatprep.mubr.bf16.mxu0 0
    %226 = vmatmul.mubr.bf16.gmra.mrb[0].mxu0 %v167
    %v227 = vpop.f32.mrb[0].mxu0
    %v228 = vadd.f32 %v151, %v227
    %v229 = vpop.f32.mrb[0].mxu0
    %v230 = vpop.f32.mrb[0].mxu0
    %v231 = vadd.f32 %v154, %v230
    %v232 = vpop.f32.mrb[0].mxu0
    %233 = vdwg.mxu0
    %v235 = vsel %vm75, %v64, 0
    %v238 = vsel %vm75, %v65, 0
    %v241 = vsel %vm75, %v66, 0
    %v244 = vsel %vm75, %v67, 0
    %246 = vmatprep.subr.bf16.mxu0 0
    %247 = vmatpush1.bf16.msra.mxu0 %v90
    %248 = vmatprep.subr.bf16.mxu0 0
    %249 = vmatpush1.bf16.msra.mxu0 0
    %250 = vmatprep.subr.bf16.mxu0 0
    %251 = vmatpush1.bf16.msra.mxu0 0
    %252 = vmatprep.subr.bf16.mxu0 0
    %253 = vmatpush1.bf16.msra.mxu0 0
    %254 = vmatprep.subr.bf16.mxu0 0
    %255 = vmatpush1.bf16.msra.mxu0 0
    %256 = vmatprep.subr.bf16.mxu0 0
    %257 = vmatpush1.bf16.msra.mxu0 0
    %258 = vmatprep.subr.bf16.mxu0 0
    %259 = vmatpush1.bf16.msra.mxu0 0
    %260 = vmatprep.subr.bf16.mxu0 0
    %261 = vmatpush1.bf16.msra.mxu0 0
    %262 = vmatprep.subr.bf16.mxu0 0
    %263 = vmatpush1.bf16.msra.mxu0 0
    %264 = vmatprep.subr.bf16.mxu0 0
    %265 = vmatpush1.bf16.msra.mxu0 0
    %266 = vmatprep.subr.bf16.mxu0 0
    %267 = vmatpush1.bf16.msra.mxu0 0
    %268 = vmatprep.subr.bf16.mxu0 0
    %269 = vmatpush1.bf16.msra.mxu0 0
    %270 = vmatprep.subr.bf16.mxu0 0
    %271 = vmatpush1.bf16.msra.mxu0 0
    %272 = vmatprep.subr.bf16.mxu0 0
    %273 = vmatpush1.bf16.msra.mxu0 0
    %274 = vmatprep.subr.bf16.mxu0 0
    %275 = vmatpush1.bf16.msra.mxu0 0
    %276 = vmatprep.subr.bf16.mxu0 0
    %277 = vmatpush1.bf16.msra.mxu0 0
    %278 = vmatprep.mubr.bf16.mxu0 0
    %279 = vmatmul.mubr.bf16.gmra.mrb[0].mxu0 %v235
    %v280 = vpop.f32.mrb[0].mxu0
    %v281 = vadd.f32 0.0, %v280
    %v282 = vpop.f32.mrb[0].mxu0
    %v283 = vpop.f32.mrb[0].mxu0
    %v284 = vadd.f32 0.0, %v283
    %v285 = vpop.f32.mrb[0].mxu0
    %286 = vmatprep.mubr.bf16.mxu0 0
    %287 = vmatmul.mubr.bf16.gmra.mrb[0].mxu0 %v238
    %v288 = vpop.f32.mrb[0].mxu0
    %v289 = vadd.f32 0.0, %v288
    %v290 = vpop.f32.mrb[0].mxu0
    %v291 = vpop.f32.mrb[0].mxu0
    %v292 = vadd.f32 0.0, %v291
    %v293 = vpop.f32.mrb[0].mxu0
    %294 = vmatprep.mubr.bf16.mxu0 0
    %295 = vmatmul.mubr.bf16.gmra.mrb[0].mxu0 %v241
    %v296 = vpop.f32.mrb[0].mxu0
    %v297 = vadd.f32 0.0, %v296
    %v298 = vpop.f32.mrb[0].mxu0
    %v299 = vpop.f32.mrb[0].mxu0
    %v300 = vadd.f32 0.0, %v299
    %v301 = vpop.f32.mrb[0].mxu0
    %302 = vmatprep.mubr.bf16.mxu0 0
    %303 = vmatmul.mubr.bf16.gmra.mrb[0].mxu0 %v244
    %v304 = vpop.f32.mrb[0].mxu0
    %v305 = vadd.f32 0.0, %v304
    %v306 = vpop.f32.mrb[0].mxu0
    %v307 = vpop.f32.mrb[0].mxu0
    %v308 = vadd.f32 0.0, %v307
    %v309 = vpop.f32.mrb[0].mxu0
    %310 = vdwg.mxu0
    %v311 = vadd.f32 %v204, %v281
    %v312 = vadd.f32 %v207, %v284
    %v313 = vadd.f32 %v212, %v289
    %v314 = vadd.f32 %v215, %v292
    %v315 = vadd.f32 %v220, %v297
    %v316 = vadd.f32 %v223, %v300
    %v317 = vadd.f32 %v228, %v305
    %v318 = vadd.f32 %v231, %v308
    %v319 = vld [vmem:[%s2] sm:$0x1]
    %v320 = vlaneseq
    %v321 = vshrl.u32 %v320, 7
    %v322 = vsub.s32 0, %v321
    %v323 = vrot.slane %v319, %v322
    %v324 = vmul.f32 %v311, %v323
    %v325 = vmul.f32 %v312, %v323
    %v326 = vmul.f32 %v313, %v323
    %v327 = vmul.f32 %v314, %v323
    %v328 = vmul.f32 %v315, %v323
    %v329 = vmul.f32 %v316, %v323
    %v330 = vmul.f32 %v317, %v323
    %v331 = vmul.f32 %v318, %v323
    %v332 = vld [vmem:[%s2 + $0x1] sm:$0x1]
    %v333 = vlaneseq
    %v334 = vshrl.u32 %v333, 7
    %v335 = vsub.s32 0, %v334
    %v336 = vrot.slane %v332, %v335
    %v337 = vadd.f32 %v324, %v336
    %v338 = vadd.f32 %v325, %v336
    %v339 = vadd.f32 %v326, %v336
    %v340 = vadd.f32 %v327, %v336
    %v341 = vadd.f32 %v328, %v336
    %v342 = vadd.f32 %v329, %v336
    %v343 = vadd.f32 %v330, %v336
    %v344 = vadd.f32 %v331, %v336
    %v345 = vand.u32 2147483647, %v337
    %vm346 = vcmp.le.f32.partialorder %v345, 0.7853982
    %vm347 = vcmp.lt.s32.totalorder %v337, 0
    %v348 = vand.u32 %v337, 2139095040
    %v349 = vshrl.u32 %v348, 23
    %v350 = vsub.s32 %v349, 127
    %v351 = vand.u32 2147483647, %v337
    %v352 = vand.u32 %v351, 8388607
    %v353 = vor.u32 %v352, 8388608
    %v354 = vsub.s32 0, %v353
    %v355 = vadd.s32 %v350, 1
    %vm356 = vcmp.gt.s32.totalorder %v355, 0
    %v357 = vsel %vm356, %v355, 0
    %v358 = vshrl.u32 %v357, 5
    %v359 = vand.u32 %v357, 31
    %v360 = vsub.s32 32, %v359
    %v361 = vshrl.u32 683565275, %v360
    %v362 = vshll.u32 683565275, %v359
    %v363 = vshrl.u32 2475754826, %v360
    %v364 = vor.u32 %v362, %v363
    %v365 = vshll.u32 2475754826, %v359
    %v366 = vshrl.u32 2131351028, %v360
    %v367 = vor.u32 %v365, %v366
    %v368 = vshll.u32 2131351028, %v359
    %v369 = vshrl.u32 2102212464, %v360
    %v370 = vor.u32 %v368, %v369
    %v371 = vshll.u32 2102212464, %v359
    %v372 = vshrl.u32 920167782, %v360
    %v373 = vor.u32 %v371, %v372
    %v374 = vshll.u32 920167782, %v359
    %v375 = vshrl.u32 1326507024, %v360
    %v376 = vor.u32 %v374, %v375
    %vm377 = vcmp.lt.s32.totalorder %v358, 1
    %vm378 = vcmp.lt.s32.totalorder %v358, 2
    %vm379 = vcmp.lt.s32.totalorder %v358, 3
    %vm380 = vcmp.lt.s32.totalorder %v358, 4
    %v381 = vsel %vm377, %v361, %v364
    %v382 = vsel %vm380, %v370, 2102212464
    %v383 = vsel %vm379, %v367, %v382
    %v384 = vsel %vm378, %v381, %v383
    %v385 = vsel %vm377, %v364, %v367
    %v386 = vsel %vm380, %v373, 920167782
    %v387 = vsel %vm379, %v370, %v386
    %v388 = vsel %vm378, %v385, %v387
    %v389 = vsel %vm377, %v367, %v370
    %v390 = vsel %vm380, %v376, 1326507024
    %v391 = vsel %vm379, %v373, %v390
    %v392 = vsel %vm378, %v389, %v391
    %v393 = vshll.u32 %v353, 8
    %v394 = vmul.u32.u64.compose %v393, %v392
    %v395 = vextract.low.u32 %v394
    %v396 = vextract.high.u32 %v394
    %v397 = vmul.u32.u64.compose %v393, %v388
    %v398 = vextract.low.u32 %v397
    %v399 = vextract.high.u32 %v397
    %v400 = vmul.u32 %v393, %v384
    %v401 = vadd.s32 %v396, %v398
    %vm402 = vc.u32 %v396, %v398
    %v403 = vadd.s32 %v399, 1
    %v404 = vsel %vm402, %v403, %v399
    %v405 = vadd.s32 %v400, %v404
    %v406 = vadd.s32 %v405, 536870912
    %v407 = vshrl.u32 %v406, 30
    %v408 = vshll.u32 %v407, 30
    %v409 = vsub.s32 %v405, %v408
    %vm410 = vcmp.lt.s32.totalorder %v409, 0
    %v411 = vsub.s32 0, %v409
    %v412 = vsel %vm410, %v411, %v409
    %v413 = vclz %v412
    %v414 = vsub.s32 %v413, 2
    %vm415 = vcmp.gt.s32.totalorder 0, %v414
    %v416 = vsel %vm415, 0, %v414
    %v417 = vsub.s32 32, %v416
    %v418 = vshll.u32 %v409, %v416
    %v419 = vshrl.u32 %v401, %v417
    %v420 = vor.u32 %v418, %v419
    %v421 = vsub.s32 4294967266, %v416
    %v422 = vadd.s32 %v421, 127
    %v423 = vshll.u32 %v422, 23
    %v424 = vor.u32 4788187, %v423
    %v425 = vand.u32 2147483647, %v424
    %v427 = vcvt.s32.f32 %v420
    %v428 = vmul.f32 %v427, %v425
    %v429 = vxor.u32 %v428, 2147483648
    %v430 = vsel %vm347, %v429, %v428
    %v431 = vsub.s32 4, %v407
    %v432 = vsel %vm347, %v431, %v407
    %v433 = vsel %vm346, %v337, %v430
    %v434 = vsel %vm346, 0, %v432
    %v435 = vcosq.f32.pop %v433
    %v436 = vsinq.f32.pop %v433
    %vm437 = vweird.f32 %v337
    %v438 = vadd.s32 %v434, 3
    %v439 = vand.u32 %v438, 3
    %vm440 = vcmp.lt.s32.totalorder %v439, 2
    %vm441 = vcmp.eq.s32.totalorder %v439, 0
    %v442 = vxor.u32 %v436, 2147483648
    %v443 = vsel %vm441, %v435, %v442
    %vm444 = vcmp.eq.s32.totalorder %v439, 2
    %v445 = vxor.u32 %v435, 2147483648
    %v446 = vsel %vm444, %v445, %v436
    %v447 = vsel %vm440, %v443, %v446
    %v448 = vsel %vm437, nan, %v447
    %v449 = vand.u32 2147483647, %v338
    %vm450 = vcmp.le.f32.partialorder %v449, 0.7853982
    %vm451 = vcmp.lt.s32.totalorder %v338, 0
    %v452 = vand.u32 %v338, 2139095040
    %v453 = vshrl.u32 %v452, 23
    %v454 = vsub.s32 %v453, 127
    %v455 = vand.u32 2147483647, %v338
    %v456 = vand.u32 %v455, 8388607
    %v457 = vor.u32 %v456, 8388608
    %v458 = vsub.s32 0, %v457
    %v459 = vadd.s32 %v454, 1
    %vm460 = vcmp.gt.s32.totalorder %v459, 0
    %v461 = vsel %vm460, %v459, 0
    %v462 = vshrl.u32 %v461, 5
    %v463 = vand.u32 %v461, 31
    %v464 = vsub.s32 32, %v463
    %v465 = vshrl.u32 683565275, %v464
    %v466 = vshll.u32 683565275, %v463
    %v467 = vshrl.u32 2475754826, %v464
    %v468 = vor.u32 %v466, %v467
    %v469 = vshll.u32 2475754826, %v463
    %v470 = vshrl.u32 2131351028, %v464
    %v471 = vor.u32 %v469, %v470
    %v472 = vshll.u32 2131351028, %v463
    %v473 = vshrl.u32 2102212464, %v464
    %v474 = vor.u32 %v472, %v473
    %v475 = vshll.u32 2102212464, %v463
    %v476 = vshrl.u32 920167782, %v464
    %v477 = vor.u32 %v475, %v476
    %v478 = vshll.u32 920167782, %v463
    %v479 = vshrl.u32 1326507024, %v464
    %v480 = vor.u32 %v478, %v479
    %vm481 = vcmp.lt.s32.totalorder %v462, 1
    %vm482 = vcmp.lt.s32.totalorder %v462, 2
    %vm483 = vcmp.lt.s32.totalorder %v462, 3
    %vm484 = vcmp.lt.s32.totalorder %v462, 4
    %v485 = vsel %vm481, %v465, %v468
    %v486 = vsel %vm484, %v474, 2102212464
    %v487 = vsel %vm483, %v471, %v486
    %v488 = vsel %vm482, %v485, %v487
    %v489 = vsel %vm481, %v468, %v471
    %v490 = vsel %vm484, %v477, 920167782
    %v491 = vsel %vm483, %v474, %v490
    %v492 = vsel %vm482, %v489, %v491
    %v493 = vsel %vm481, %v471, %v474
    %v494 = vsel %vm484, %v480, 1326507024
    %v495 = vsel %vm483, %v477, %v494
    %v496 = vsel %vm482, %v493, %v495
    %v497 = vshll.u32 %v457, 8
    %v498 = vmul.u32.u64.compose %v497, %v496
    %v499 = vextract.low.u32 %v498
    %v500 = vextract.high.u32 %v498
    %v501 = vmul.u32.u64.compose %v497, %v492
    %v502 = vextract.low.u32 %v501
    %v503 = vextract.high.u32 %v501
    %v504 = vmul.u32 %v497, %v488
    %v505 = vadd.s32 %v500, %v502
    %vm506 = vc.u32 %v500, %v502
    %v507 = vadd.s32 %v503, 1
    %v508 = vsel %vm506, %v507, %v503
    %v509 = vadd.s32 %v504, %v508
    %v510 = vadd.s32 %v509, 536870912
    %v511 = vshrl.u32 %v510, 30
    %v512 = vshll.u32 %v511, 30
    %v513 = vsub.s32 %v509, %v512
    %vm514 = vcmp.lt.s32.totalorder %v513, 0
    %v515 = vsub.s32 0, %v513
    %v516 = vsel %vm514, %v515, %v513
    %v517 = vclz %v516
    %v518 = vsub.s32 %v517, 2
    %vm519 = vcmp.gt.s32.totalorder 0, %v518
    %v520 = vsel %vm519, 0, %v518
    %v521 = vsub.s32 32, %v520
    %v522 = vshll.u32 %v513, %v520
    %v523 = vshrl.u32 %v505, %v521
    %v524 = vor.u32 %v522, %v523
    %v525 = vsub.s32 4294967266, %v520
    %v526 = vadd.s32 %v525, 127
    %v527 = vshll.u32 %v526, 23
    %v528 = vor.u32 4788187, %v527
    %v529 = vand.u32 2147483647, %v528
    %v531 = vcvt.s32.f32 %v524
    %v532 = vmul.f32 %v531, %v529
    %v533 = vxor.u32 %v532, 2147483648
    %v534 = vsel %vm451, %v533, %v532
    %v535 = vsub.s32 4, %v511
    %v536 = vsel %vm451, %v535, %v511
    %v537 = vsel %vm450, %v338, %v534
    %v538 = vsel %vm450, 0, %v536
    %v539 = vcosq.f32.pop %v537
    %v540 = vsinq.f32.pop %v537
    %vm541 = vweird.f32 %v338
    %v542 = vadd.s32 %v538, 3
    %v543 = vand.u32 %v542, 3
    %vm544 = vcmp.lt.s32.totalorder %v543, 2
    %vm545 = vcmp.eq.s32.totalorder %v543, 0
    %v546 = vxor.u32 %v540, 2147483648
    %v547 = vsel %vm545, %v539, %v546
    %vm548 = vcmp.eq.s32.totalorder %v543, 2
    %v549 = vxor.u32 %v539, 2147483648
    %v550 = vsel %vm548, %v549, %v540
    %v551 = vsel %vm544, %v547, %v550
    %v552 = vsel %vm541, nan, %v551
    %v553 = vand.u32 2147483647, %v339
    %vm554 = vcmp.le.f32.partialorder %v553, 0.7853982
    %vm555 = vcmp.lt.s32.totalorder %v339, 0
    %v556 = vand.u32 %v339, 2139095040
    %v557 = vshrl.u32 %v556, 23
    %v558 = vsub.s32 %v557, 127
    %v559 = vand.u32 2147483647, %v339
    %v560 = vand.u32 %v559, 8388607
    %v561 = vor.u32 %v560, 8388608
    %v562 = vsub.s32 0, %v561
    %v563 = vadd.s32 %v558, 1
    %vm564 = vcmp.gt.s32.totalorder %v563, 0
    %v565 = vsel %vm564, %v563, 0
    %v566 = vshrl.u32 %v565, 5
    %v567 = vand.u32 %v565, 31
    %v568 = vsub.s32 32, %v567
    %v569 = vshrl.u32 683565275, %v568
    %v570 = vshll.u32 683565275, %v567
    %v571 = vshrl.u32 2475754826, %v568
    %v572 = vor.u32 %v570, %v571
    %v573 = vshll.u32 2475754826, %v567
    %v574 = vshrl.u32 2131351028, %v568
    %v575 = vor.u32 %v573, %v574
    %v576 = vshll.u32 2131351028, %v567
    %v577 = vshrl.u32 2102212464, %v568
    %v578 = vor.u32 %v576, %v577
    %v579 = vshll.u32 2102212464, %v567
    %v580 = vshrl.u32 920167782, %v568
    %v581 = vor.u32 %v579, %v580
    %v582 = vshll.u32 920167782, %v567
    %v583 = vshrl.u32 1326507024, %v568
    %v584 = vor.u32 %v582, %v583
    %vm585 = vcmp.lt.s32.totalorder %v566, 1
    %vm586 = vcmp.lt.s32.totalorder %v566, 2
    %vm587 = vcmp.lt.s32.totalorder %v566, 3
    %vm588 = vcmp.lt.s32.totalorder %v566, 4
    %v589 = vsel %vm585, %v569, %v572
    %v590 = vsel %vm588, %v578, 2102212464
    %v591 = vsel %vm587, %v575, %v590
    %v592 = vsel %vm586, %v589, %v591
    %v593 = vsel %vm585, %v572, %v575
    %v594 = vsel %vm588, %v581, 920167782
    %v595 = vsel %vm587, %v578, %v594
    %v596 = vsel %vm586, %v593, %v595
    %v597 = vsel %vm585, %v575, %v578
    %v598 = vsel %vm588, %v584, 1326507024
    %v599 = vsel %vm587, %v581, %v598
    %v600 = vsel %vm586, %v597, %v599
    %v601 = vshll.u32 %v561, 8
    %v602 = vmul.u32.u64.compose %v601, %v600
    %v603 = vextract.low.u32 %v602
    %v604 = vextract.high.u32 %v602
    %v605 = vmul.u32.u64.compose %v601, %v596
    %v606 = vextract.low.u32 %v605
    %v607 = vextract.high.u32 %v605
    %v608 = vmul.u32 %v601, %v592
    %v609 = vadd.s32 %v604, %v606
    %vm610 = vc.u32 %v604, %v606
    %v611 = vadd.s32 %v607, 1
    %v612 = vsel %vm610, %v611, %v607
    %v613 = vadd.s32 %v608, %v612
    %v614 = vadd.s32 %v613, 536870912
    %v615 = vshrl.u32 %v614, 30
    %v616 = vshll.u32 %v615, 30
    %v617 = vsub.s32 %v613, %v616
    %vm618 = vcmp.lt.s32.totalorder %v617, 0
    %v619 = vsub.s32 0, %v617
    %v620 = vsel %vm618, %v619, %v617
    %v621 = vclz %v620
    %v622 = vsub.s32 %v621, 2
    %vm623 = vcmp.gt.s32.totalorder 0, %v622
    %v624 = vsel %vm623, 0, %v622
    %v625 = vsub.s32 32, %v624
    %v626 = vshll.u32 %v617, %v624
    %v627 = vshrl.u32 %v609, %v625
    %v628 = vor.u32 %v626, %v627
    %v629 = vsub.s32 4294967266, %v624
    %v630 = vadd.s32 %v629, 127
    %v631 = vshll.u32 %v630, 23
    %v632 = vor.u32 4788187, %v631
    %v633 = vand.u32 2147483647, %v632
    %v635 = vcvt.s32.f32 %v628
    %v636 = vmul.f32 %v635, %v633
    %v637 = vxor.u32 %v636, 2147483648
    %v638 = vsel %vm555, %v637, %v636
    %v639 = vsub.s32 4, %v615
    %v640 = vsel %vm555, %v639, %v615
    %v641 = vsel %vm554, %v339, %v638
    %v642 = vsel %vm554, 0, %v640
    %v643 = vcosq.f32.pop %v641
    %v644 = vsinq.f32.pop %v641
    %vm645 = vweird.f32 %v339
    %v646 = vadd.s32 %v642, 3
    %v647 = vand.u32 %v646, 3
    %vm648 = vcmp.lt.s32.totalorder %v647, 2
    %vm649 = vcmp.eq.s32.totalorder %v647, 0
    %v650 = vxor.u32 %v644, 2147483648
    %v651 = vsel %vm649, %v643, %v650
    %vm652 = vcmp.eq.s32.totalorder %v647, 2
    %v653 = vxor.u32 %v643, 2147483648
    %v654 = vsel %vm652, %v653, %v644
    %v655 = vsel %vm648, %v651, %v654
    %v656 = vsel %vm645, nan, %v655
    %v657 = vand.u32 2147483647, %v340
    %vm658 = vcmp.le.f32.partialorder %v657, 0.7853982
    %vm659 = vcmp.lt.s32.totalorder %v340, 0
    %v660 = vand.u32 %v340, 2139095040
    %v661 = vshrl.u32 %v660, 23
    %v662 = vsub.s32 %v661, 127
    %v663 = vand.u32 2147483647, %v340
    %v664 = vand.u32 %v663, 8388607
    %v665 = vor.u32 %v664, 8388608
    %v666 = vsub.s32 0, %v665
    %v667 = vadd.s32 %v662, 1
    %vm668 = vcmp.gt.s32.totalorder %v667, 0
    %v669 = vsel %vm668, %v667, 0
    %v670 = vshrl.u32 %v669, 5
    %v671 = vand.u32 %v669, 31
    %v672 = vsub.s32 32, %v671
    %v673 = vshrl.u32 683565275, %v672
    %v674 = vshll.u32 683565275, %v671
    %v675 = vshrl.u32 2475754826, %v672
    %v676 = vor.u32 %v674, %v675
    %v677 = vshll.u32 2475754826, %v671
    %v678 = vshrl.u32 2131351028, %v672
    %v679 = vor.u32 %v677, %v678
    %v680 = vshll.u32 2131351028, %v671
    %v681 = vshrl.u32 2102212464, %v672
    %v682 = vor.u32 %v680, %v681
    %v683 = vshll.u32 2102212464, %v671
    %v684 = vshrl.u32 920167782, %v672
    %v685 = vor.u32 %v683, %v684
    %v686 = vshll.u32 920167782, %v671
    %v687 = vshrl.u32 1326507024, %v672
    %v688 = vor.u32 %v686, %v687
    %vm689 = vcmp.lt.s32.totalorder %v670, 1
    %vm690 = vcmp.lt.s32.totalorder %v670, 2
    %vm691 = vcmp.lt.s32.totalorder %v670, 3
    %vm692 = vcmp.lt.s32.totalorder %v670, 4
    %v693 = vsel %vm689, %v673, %v676
    %v694 = vsel %vm692, %v682, 2102212464
    %v695 = vsel %vm691, %v679, %v694
    %v696 = vsel %vm690, %v693, %v695
    %v697 = vsel %vm689, %v676, %v679
    %v698 = vsel %vm692, %v685, 920167782
    %v699 = vsel %vm691, %v682, %v698
    %v700 = vsel %vm690, %v697, %v699
    %v701 = vsel %vm689, %v679, %v682
    %v702 = vsel %vm692, %v688, 1326507024
    %v703 = vsel %vm691, %v685, %v702
    %v704 = vsel %vm690, %v701, %v703
    %v705 = vshll.u32 %v665, 8
    %v706 = vmul.u32.u64.compose %v705, %v704
    %v707 = vextract.low.u32 %v706
    %v708 = vextract.high.u32 %v706
    %v709 = vmul.u32.u64.compose %v705, %v700
    %v710 = vextract.low.u32 %v709
    %v711 = vextract.high.u32 %v709
    %v712 = vmul.u32 %v705, %v696
    %v713 = vadd.s32 %v708, %v710
    %vm714 = vc.u32 %v708, %v710
    %v715 = vadd.s32 %v711, 1
    %v716 = vsel %vm714, %v715, %v711
    %v717 = vadd.s32 %v712, %v716
    %v718 = vadd.s32 %v717, 536870912
    %v719 = vshrl.u32 %v718, 30
    %v720 = vshll.u32 %v719, 30
    %v721 = vsub.s32 %v717, %v720
    %vm722 = vcmp.lt.s32.totalorder %v721, 0
    %v723 = vsub.s32 0, %v721
    %v724 = vsel %vm722, %v723, %v721
    %v725 = vclz %v724
    %v726 = vsub.s32 %v725, 2
    %vm727 = vcmp.gt.s32.totalorder 0, %v726
    %v728 = vsel %vm727, 0, %v726
    %v729 = vsub.s32 32, %v728
    %v730 = vshll.u32 %v721, %v728
    %v731 = vshrl.u32 %v713, %v729
    %v732 = vor.u32 %v730, %v731
    %v733 = vsub.s32 4294967266, %v728
    %v734 = vadd.s32 %v733, 127
    %v735 = vshll.u32 %v734, 23
    %v736 = vor.u32 4788187, %v735
    %v737 = vand.u32 2147483647, %v736
    %v739 = vcvt.s32.f32 %v732
    %v740 = vmul.f32 %v739, %v737
    %v741 = vxor.u32 %v740, 2147483648
    %v742 = vsel %vm659, %v741, %v740
    %v743 = vsub.s32 4, %v719
    %v744 = vsel %vm659, %v743, %v719
    %v745 = vsel %vm658, %v340, %v742
    %v746 = vsel %vm658, 0, %v744
    %v747 = vcosq.f32.pop %v745
    %v748 = vsinq.f32.pop %v745
    %vm749 = vweird.f32 %v340
    %v750 = vadd.s32 %v746, 3
    %v751 = vand.u32 %v750, 3
    %vm752 = vcmp.lt.s32.totalorder %v751, 2
    %vm753 = vcmp.eq.s32.totalorder %v751, 0
    %v754 = vxor.u32 %v748, 2147483648
    %v755 = vsel %vm753, %v747, %v754
    %vm756 = vcmp.eq.s32.totalorder %v751, 2
    %v757 = vxor.u32 %v747, 2147483648
    %v758 = vsel %vm756, %v757, %v748
    %v759 = vsel %vm752, %v755, %v758
    %v760 = vsel %vm749, nan, %v759
    %v761 = vand.u32 2147483647, %v341
    %vm762 = vcmp.le.f32.partialorder %v761, 0.7853982
    %vm763 = vcmp.lt.s32.totalorder %v341, 0
    %v764 = vand.u32 %v341, 2139095040
    %v765 = vshrl.u32 %v764, 23
    %v766 = vsub.s32 %v765, 127
    %v767 = vand.u32 2147483647, %v341
    %v768 = vand.u32 %v767, 8388607
    %v769 = vor.u32 %v768, 8388608
    %v770 = vsub.s32 0, %v769
    %v771 = vadd.s32 %v766, 1
    %vm772 = vcmp.gt.s32.totalorder %v771, 0
    %v773 = vsel %vm772, %v771, 0
    %v774 = vshrl.u32 %v773, 5
    %v775 = vand.u32 %v773, 31
    %v776 = vsub.s32 32, %v775
    %v777 = vshrl.u32 683565275, %v776
    %v778 = vshll.u32 683565275, %v775
    %v779 = vshrl.u32 2475754826, %v776
    %v780 = vor.u32 %v778, %v779
    %v781 = vshll.u32 2475754826, %v775
    %v782 = vshrl.u32 2131351028, %v776
    %v783 = vor.u32 %v781, %v782
    %v784 = vshll.u32 2131351028, %v775
    %v785 = vshrl.u32 2102212464, %v776
    %v786 = vor.u32 %v784, %v785
    %v787 = vshll.u32 2102212464, %v775
    %v788 = vshrl.u32 920167782, %v776
    %v789 = vor.u32 %v787, %v788
    %v790 = vshll.u32 920167782, %v775
    %v791 = vshrl.u32 1326507024, %v776
    %v792 = vor.u32 %v790, %v791
    %vm793 = vcmp.lt.s32.totalorder %v774, 1
    %vm794 = vcmp.lt.s32.totalorder %v774, 2
    %vm795 = vcmp.lt.s32.totalorder %v774, 3
    %vm796 = vcmp.lt.s32.totalorder %v774, 4
    %v797 = vsel %vm793, %v777, %v780
    %v798 = vsel %vm796, %v786, 2102212464
    %v799 = vsel %vm795, %v783, %v798
    %v800 = vsel %vm794, %v797, %v799
    %v801 = vsel %vm793, %v780, %v783
    %v802 = vsel %vm796, %v789, 920167782
    %v803 = vsel %vm795, %v786, %v802
    %v804 = vsel %vm794, %v801, %v803
    %v805 = vsel %vm793, %v783, %v786
    %v806 = vsel %vm796, %v792, 1326507024
    %v807 = vsel %vm795, %v789, %v806
    %v808 = vsel %vm794, %v805, %v807
    %v809 = vshll.u32 %v769, 8
    %v810 = vmul.u32.u64.compose %v809, %v808
    %v811 = vextract.low.u32 %v810
    %v812 = vextract.high.u32 %v810
    %v813 = vmul.u32.u64.compose %v809, %v804
    %v814 = vextract.low.u32 %v813
    %v815 = vextract.high.u32 %v813
    %v816 = vmul.u32 %v809, %v800
    %v817 = vadd.s32 %v812, %v814
    %vm818 = vc.u32 %v812, %v814
    %v819 = vadd.s32 %v815, 1
    %v820 = vsel %vm818, %v819, %v815
    %v821 = vadd.s32 %v816, %v820
    %v822 = vadd.s32 %v821, 536870912
    %v823 = vshrl.u32 %v822, 30
    %v824 = vshll.u32 %v823, 30
    %v825 = vsub.s32 %v821, %v824
    %vm826 = vcmp.lt.s32.totalorder %v825, 0
    %v827 = vsub.s32 0, %v825
    %v828 = vsel %vm826, %v827, %v825
    %v829 = vclz %v828
    %v830 = vsub.s32 %v829, 2
    %vm831 = vcmp.gt.s32.totalorder 0, %v830
    %v832 = vsel %vm831, 0, %v830
    %v833 = vsub.s32 32, %v832
    %v834 = vshll.u32 %v825, %v832
    %v835 = vshrl.u32 %v817, %v833
    %v836 = vor.u32 %v834, %v835
    %v837 = vsub.s32 4294967266, %v832
    %v838 = vadd.s32 %v837, 127
    %v839 = vshll.u32 %v838, 23
    %v840 = vor.u32 4788187, %v839
    %v841 = vand.u32 2147483647, %v840
    %v843 = vcvt.s32.f32 %v836
    %v844 = vmul.f32 %v843, %v841
    %v845 = vxor.u32 %v844, 2147483648
    %v846 = vsel %vm763, %v845, %v844
    %v847 = vsub.s32 4, %v823
    %v848 = vsel %vm763, %v847, %v823
    %v849 = vsel %vm762, %v341, %v846
    %v850 = vsel %vm762, 0, %v848
    %v851 = vcosq.f32.pop %v849
    %v852 = vsinq.f32.pop %v849
    %vm853 = vweird.f32 %v341
    %v854 = vadd.s32 %v850, 3
    %v855 = vand.u32 %v854, 3
    %vm856 = vcmp.lt.s32.totalorder %v855, 2
    %vm857 = vcmp.eq.s32.totalorder %v855, 0
    %v858 = vxor.u32 %v852, 2147483648
    %v859 = vsel %vm857, %v851, %v858
    %vm860 = vcmp.eq.s32.totalorder %v855, 2
    %v861 = vxor.u32 %v851, 2147483648
    %v862 = vsel %vm860, %v861, %v852
    %v863 = vsel %vm856, %v859, %v862
    %v864 = vsel %vm853, nan, %v863
    %v865 = vand.u32 2147483647, %v342
    %vm866 = vcmp.le.f32.partialorder %v865, 0.7853982
    %vm867 = vcmp.lt.s32.totalorder %v342, 0
    %v868 = vand.u32 %v342, 2139095040
    %v869 = vshrl.u32 %v868, 23
    %v870 = vsub.s32 %v869, 127
    %v871 = vand.u32 2147483647, %v342
    %v872 = vand.u32 %v871, 8388607
    %v873 = vor.u32 %v872, 8388608
    %v874 = vsub.s32 0, %v873
    %v875 = vadd.s32 %v870, 1
    %vm876 = vcmp.gt.s32.totalorder %v875, 0
    %v877 = vsel %vm876, %v875, 0
    %v878 = vshrl.u32 %v877, 5
    %v879 = vand.u32 %v877, 31
    %v880 = vsub.s32 32, %v879
    %v881 = vshrl.u32 683565275, %v880
    %v882 = vshll.u32 683565275, %v879
    %v883 = vshrl.u32 2475754826, %v880
    %v884 = vor.u32 %v882, %v883
    %v885 = vshll.u32 2475754826, %v879
    %v886 = vshrl.u32 2131351028, %v880
    %v887 = vor.u32 %v885, %v886
    %v888 = vshll.u32 2131351028, %v879
    %v889 = vshrl.u32 2102212464, %v880
    %v890 = vor.u32 %v888, %v889
    %v891 = vshll.u32 2102212464, %v879
    %v892 = vshrl.u32 920167782, %v880
    %v893 = vor.u32 %v891, %v892
    %v894 = vshll.u32 920167782, %v879
    %v895 = vshrl.u32 1326507024, %v880
    %v896 = vor.u32 %v894, %v895
    %vm897 = vcmp.lt.s32.totalorder %v878, 1
    %vm898 = vcmp.lt.s32.totalorder %v878, 2
    %vm899 = vcmp.lt.s32.totalorder %v878, 3
    %vm900 = vcmp.lt.s32.totalorder %v878, 4
    %v901 = vsel %vm897, %v881, %v884
    %v902 = vsel %vm900, %v890, 2102212464
    %v903 = vsel %vm899, %v887, %v902
    %v904 = vsel %vm898, %v901, %v903
    %v905 = vsel %vm897, %v884, %v887
    %v906 = vsel %vm900, %v893, 920167782
    %v907 = vsel %vm899, %v890, %v906
    %v908 = vsel %vm898, %v905, %v907
    %v909 = vsel %vm897, %v887, %v890
    %v910 = vsel %vm900, %v896, 1326507024
    %v911 = vsel %vm899, %v893, %v910
    %v912 = vsel %vm898, %v909, %v911
    %v913 = vshll.u32 %v873, 8
    %v914 = vmul.u32.u64.compose %v913, %v912
    %v915 = vextract.low.u32 %v914
    %v916 = vextract.high.u32 %v914
    %v917 = vmul.u32.u64.compose %v913, %v908
    %v918 = vextract.low.u32 %v917
    %v919 = vextract.high.u32 %v917
    %v920 = vmul.u32 %v913, %v904
    %v921 = vadd.s32 %v916, %v918
    %vm922 = vc.u32 %v916, %v918
    %v923 = vadd.s32 %v919, 1
    %v924 = vsel %vm922, %v923, %v919
    %v925 = vadd.s32 %v920, %v924
    %v926 = vadd.s32 %v925, 536870912
    %v927 = vshrl.u32 %v926, 30
    %v928 = vshll.u32 %v927, 30
    %v929 = vsub.s32 %v925, %v928
    %vm930 = vcmp.lt.s32.totalorder %v929, 0
    %v931 = vsub.s32 0, %v929
    %v932 = vsel %vm930, %v931, %v929
    %v933 = vclz %v932
    %v934 = vsub.s32 %v933, 2
    %vm935 = vcmp.gt.s32.totalorder 0, %v934
    %v936 = vsel %vm935, 0, %v934
    %v937 = vsub.s32 32, %v936
    %v938 = vshll.u32 %v929, %v936
    %v939 = vshrl.u32 %v921, %v937
    %v940 = vor.u32 %v938, %v939
    %v941 = vsub.s32 4294967266, %v936
    %v942 = vadd.s32 %v941, 127
    %v943 = vshll.u32 %v942, 23
    %v944 = vor.u32 4788187, %v943
    %v945 = vand.u32 2147483647, %v944
    %v947 = vcvt.s32.f32 %v940
    %v948 = vmul.f32 %v947, %v945
    %v949 = vxor.u32 %v948, 2147483648
    %v950 = vsel %vm867, %v949, %v948
    %v951 = vsub.s32 4, %v927
    %v952 = vsel %vm867, %v951, %v927
    %v953 = vsel %vm866, %v342, %v950
    %v954 = vsel %vm866, 0, %v952
    %v955 = vcosq.f32.pop %v953
    %v956 = vsinq.f32.pop %v953
    %vm957 = vweird.f32 %v342
    %v958 = vadd.s32 %v954, 3
    %v959 = vand.u32 %v958, 3
    %vm960 = vcmp.lt.s32.totalorder %v959, 2
    %vm961 = vcmp.eq.s32.totalorder %v959, 0
    %v962 = vxor.u32 %v956, 2147483648
    %v963 = vsel %vm961, %v955, %v962
    %vm964 = vcmp.eq.s32.totalorder %v959, 2
    %v965 = vxor.u32 %v955, 2147483648
    %v966 = vsel %vm964, %v965, %v956
    %v967 = vsel %vm960, %v963, %v966
    %v968 = vsel %vm957, nan, %v967
    %v969 = vand.u32 2147483647, %v343
    %vm970 = vcmp.le.f32.partialorder %v969, 0.7853982
    %vm971 = vcmp.lt.s32.totalorder %v343, 0
    %v972 = vand.u32 %v343, 2139095040
    %v973 = vshrl.u32 %v972, 23
    %v974 = vsub.s32 %v973, 127
    %v975 = vand.u32 2147483647, %v343
    %v976 = vand.u32 %v975, 8388607
    %v977 = vor.u32 %v976, 8388608
    %v978 = vsub.s32 0, %v977
    %v979 = vadd.s32 %v974, 1
    %vm980 = vcmp.gt.s32.totalorder %v979, 0
    %v981 = vsel %vm980, %v979, 0
    %v982 = vshrl.u32 %v981, 5
    %v983 = vand.u32 %v981, 31
    %v984 = vsub.s32 32, %v983
    %v985 = vshrl.u32 683565275, %v984
    %v986 = vshll.u32 683565275, %v983
    %v987 = vshrl.u32 2475754826, %v984
    %v988 = vor.u32 %v986, %v987
    %v989 = vshll.u32 2475754826, %v983
    %v990 = vshrl.u32 2131351028, %v984
    %v991 = vor.u32 %v989, %v990
    %v992 = vshll.u32 2131351028, %v983
    %v993 = vshrl.u32 2102212464, %v984
    %v994 = vor.u32 %v992, %v993
    %v995 = vshll.u32 2102212464, %v983
    %v996 = vshrl.u32 920167782, %v984
    %v997 = vor.u32 %v995, %v996
    %v998 = vshll.u32 920167782, %v983
    %v999 = vshrl.u32 1326507024, %v984
    %v1000 = vor.u32 %v998, %v999
    %vm1001 = vcmp.lt.s32.totalorder %v982, 1
    %vm1002 = vcmp.lt.s32.totalorder %v982, 2
    %vm1003 = vcmp.lt.s32.totalorder %v982, 3
    %vm1004 = vcmp.lt.s32.totalorder %v982, 4
    %v1005 = vsel %vm1001, %v985, %v988
    %v1006 = vsel %vm1004, %v994, 2102212464
    %v1007 = vsel %vm1003, %v991, %v1006
    %v1008 = vsel %vm1002, %v1005, %v1007
    %v1009 = vsel %vm1001, %v988, %v991
    %v1010 = vsel %vm1004, %v997, 920167782
    %v1011 = vsel %vm1003, %v994, %v1010
    %v1012 = vsel %vm1002, %v1009, %v1011
    %v1013 = vsel %vm1001, %v991, %v994
    %v1014 = vsel %vm1004, %v1000, 1326507024
    %v1015 = vsel %vm1003, %v997, %v1014
    %v1016 = vsel %vm1002, %v1013, %v1015
    %v1017 = vshll.u32 %v977, 8
    %v1018 = vmul.u32.u64.compose %v1017, %v1016
    %v1019 = vextract.low.u32 %v1018
    %v1020 = vextract.high.u32 %v1018
    %v1021 = vmul.u32.u64.compose %v1017, %v1012
    %v1022 = vextract.low.u32 %v1021
    %v1023 = vextract.high.u32 %v1021
    %v1024 = vmul.u32 %v1017, %v1008
    %v1025 = vadd.s32 %v1020, %v1022
    %vm1026 = vc.u32 %v1020, %v1022
    %v1027 = vadd.s32 %v1023, 1
    %v1028 = vsel %vm1026, %v1027, %v1023
    %v1029 = vadd.s32 %v1024, %v1028
    %v1030 = vadd.s32 %v1029, 536870912
    %v1031 = vshrl.u32 %v1030, 30
    %v1032 = vshll.u32 %v1031, 30
    %v1033 = vsub.s32 %v1029, %v1032
    %vm1034 = vcmp.lt.s32.totalorder %v1033, 0
    %v1035 = vsub.s32 0, %v1033
    %v1036 = vsel %vm1034, %v1035, %v1033
    %v1037 = vclz %v1036
    %v1038 = vsub.s32 %v1037, 2
    %vm1039 = vcmp.gt.s32.totalorder 0, %v1038
    %v1040 = vsel %vm1039, 0, %v1038
    %v1041 = vsub.s32 32, %v1040
    %v1042 = vshll.u32 %v1033, %v1040
    %v1043 = vshrl.u32 %v1025, %v1041
    %v1044 = vor.u32 %v1042, %v1043
    %v1045 = vsub.s32 4294967266, %v1040
    %v1046 = vadd.s32 %v1045, 127
    %v1047 = vshll.u32 %v1046, 23
    %v1048 = vor.u32 4788187, %v1047
    %v1049 = vand.u32 2147483647, %v1048
    %v1051 = vcvt.s32.f32 %v1044
    %v1052 = vmul.f32 %v1051, %v1049
    %v1053 = vxor.u32 %v1052, 2147483648
    %v1054 = vsel %vm971, %v1053, %v1052
    %v1055 = vsub.s32 4, %v1031
    %v1056 = vsel %vm971, %v1055, %v1031
    %v1057 = vsel %vm970, %v343, %v1054
    %v1058 = vsel %vm970, 0, %v1056
    %v1059 = vcosq.f32.pop %v1057
    %v1060 = vsinq.f32.pop %v1057
    %vm1061 = vweird.f32 %v343
    %v1062 = vadd.s32 %v1058, 3
    %v1063 = vand.u32 %v1062, 3
    %vm1064 = vcmp.lt.s32.totalorder %v1063, 2
    %vm1065 = vcmp.eq.s32.totalorder %v1063, 0
    %v1066 = vxor.u32 %v1060, 2147483648
    %v1067 = vsel %vm1065, %v1059, %v1066
    %vm1068 = vcmp.eq.s32.totalorder %v1063, 2
    %v1069 = vxor.u32 %v1059, 2147483648
    %v1070 = vsel %vm1068, %v1069, %v1060
    %v1071 = vsel %vm1064, %v1067, %v1070
    %v1072 = vsel %vm1061, nan, %v1071
    %v1073 = vand.u32 2147483647, %v344
    %vm1074 = vcmp.le.f32.partialorder %v1073, 0.7853982
    %vm1075 = vcmp.lt.s32.totalorder %v344, 0
    %v1076 = vand.u32 %v344, 2139095040
    %v1077 = vshrl.u32 %v1076, 23
    %v1078 = vsub.s32 %v1077, 127
    %v1079 = vand.u32 2147483647, %v344
    %v1080 = vand.u32 %v1079, 8388607
    %v1081 = vor.u32 %v1080, 8388608
    %v1082 = vsub.s32 0, %v1081
    %v1083 = vadd.s32 %v1078, 1
    %vm1084 = vcmp.gt.s32.totalorder %v1083, 0
    %v1085 = vsel %vm1084, %v1083, 0
    %v1086 = vshrl.u32 %v1085, 5
    %v1087 = vand.u32 %v1085, 31
    %v1088 = vsub.s32 32, %v1087
    %v1089 = vshrl.u32 683565275, %v1088
    %v1090 = vshll.u32 683565275, %v1087
    %v1091 = vshrl.u32 2475754826, %v1088
    %v1092 = vor.u32 %v1090, %v1091
    %v1093 = vshll.u32 2475754826, %v1087
    %v1094 = vshrl.u32 2131351028, %v1088
    %v1095 = vor.u32 %v1093, %v1094
    %v1096 = vshll.u32 2131351028, %v1087
    %v1097 = vshrl.u32 2102212464, %v1088
    %v1098 = vor.u32 %v1096, %v1097
    %v1099 = vshll.u32 2102212464, %v1087
    %v1100 = vshrl.u32 920167782, %v1088
    %v1101 = vor.u32 %v1099, %v1100
    %v1102 = vshll.u32 920167782, %v1087
    %v1103 = vshrl.u32 1326507024, %v1088
    %v1104 = vor.u32 %v1102, %v1103
    %vm1105 = vcmp.lt.s32.totalorder %v1086, 1
    %vm1106 = vcmp.lt.s32.totalorder %v1086, 2
    %vm1107 = vcmp.lt.s32.totalorder %v1086, 3
    %vm1108 = vcmp.lt.s32.totalorder %v1086, 4
    %v1109 = vsel %vm1105, %v1089, %v1092
    %v1110 = vsel %vm1108, %v1098, 2102212464
    %v1111 = vsel %vm1107, %v1095, %v1110
    %v1112 = vsel %vm1106, %v1109, %v1111
    %v1113 = vsel %vm1105, %v1092, %v1095
    %v1114 = vsel %vm1108, %v1101, 920167782
    %v1115 = vsel %vm1107, %v1098, %v1114
    %v1116 = vsel %vm1106, %v1113, %v1115
    %v1117 = vsel %vm1105, %v1095, %v1098
    %v1118 = vsel %vm1108, %v1104, 1326507024
    %v1119 = vsel %vm1107, %v1101, %v1118
    %v1120 = vsel %vm1106, %v1117, %v1119
    %v1121 = vshll.u32 %v1081, 8
    %v1122 = vmul.u32.u64.compose %v1121, %v1120
    %v1123 = vextract.low.u32 %v1122
    %v1124 = vextract.high.u32 %v1122
    %v1125 = vmul.u32.u64.compose %v1121, %v1116
    %v1126 = vextract.low.u32 %v1125
    %v1127 = vextract.high.u32 %v1125
    %v1128 = vmul.u32 %v1121, %v1112
    %v1129 = vadd.s32 %v1124, %v1126
    %vm1130 = vc.u32 %v1124, %v1126
    %v1131 = vadd.s32 %v1127, 1
    %v1132 = vsel %vm1130, %v1131, %v1127
    %v1133 = vadd.s32 %v1128, %v1132
    %v1134 = vadd.s32 %v1133, 536870912
    %v1135 = vshrl.u32 %v1134, 30
    %v1136 = vshll.u32 %v1135, 30
    %v1137 = vsub.s32 %v1133, %v1136
    %vm1138 = vcmp.lt.s32.totalorder %v1137, 0
    %v1139 = vsub.s32 0, %v1137
    %v1140 = vsel %vm1138, %v1139, %v1137
    %v1141 = vclz %v1140
    %v1142 = vsub.s32 %v1141, 2
    %vm1143 = vcmp.gt.s32.totalorder 0, %v1142
    %v1144 = vsel %vm1143, 0, %v1142
    %v1145 = vsub.s32 32, %v1144
    %v1146 = vshll.u32 %v1137, %v1144
    %v1147 = vshrl.u32 %v1129, %v1145
    %v1148 = vor.u32 %v1146, %v1147
    %v1149 = vsub.s32 4294967266, %v1144
    %v1150 = vadd.s32 %v1149, 127
    %v1151 = vshll.u32 %v1150, 23
    %v1152 = vor.u32 4788187, %v1151
    %v1153 = vand.u32 2147483647, %v1152
    %v1155 = vcvt.s32.f32 %v1148
    %v1156 = vmul.f32 %v1155, %v1153
    %v1157 = vxor.u32 %v1156, 2147483648
    %v1158 = vsel %vm1075, %v1157, %v1156
    %v1159 = vsub.s32 4, %v1135
    %v1160 = vsel %vm1075, %v1159, %v1135
    %v1161 = vsel %vm1074, %v344, %v1158
    %v1162 = vsel %vm1074, 0, %v1160
    %v1163 = vcosq.f32.pop %v1161
    %v1164 = vsinq.f32.pop %v1161
    %vm1165 = vweird.f32 %v344
    %v1166 = vadd.s32 %v1162, 3
    %v1167 = vand.u32 %v1166, 3
    %vm1168 = vcmp.lt.s32.totalorder %v1167, 2
    %vm1169 = vcmp.eq.s32.totalorder %v1167, 0
    %v1170 = vxor.u32 %v1164, 2147483648
    %v1171 = vsel %vm1169, %v1163, %v1170
    %vm1172 = vcmp.eq.s32.totalorder %v1167, 2
    %v1173 = vxor.u32 %v1163, 2147483648
    %v1174 = vsel %vm1172, %v1173, %v1164
    %v1175 = vsel %vm1168, %v1171, %v1174
    %v1176 = vsel %vm1165, nan, %v1175
    %1177 = vst [vmem:[#allocation2] sm:$0xff] %v448
    %1178 = vst [vmem:[#allocation2 + $0x8] sm:$0xff] %v552
    %1179 = vst [vmem:[#allocation2 + $0x10] sm:$0xff] %v656
    %1180 = vst [vmem:[#allocation2 + $0x18] sm:$0xff] %v760
    %1181 = vst [vmem:[#allocation2 + $0x20] sm:$0xff] %v864
    %1182 = vst [vmem:[#allocation2 + $0x28] sm:$0xff] %v968
    %1183 = vst [vmem:[#allocation2 + $0x30] sm:$0xff] %v1072
    %1184 = vst [vmem:[#allocation2 + $0x38] sm:$0xff] %v1176
    // Predicated region
    $region14: #{tpu_custom_call.1} parent=1 // pred_check
      _
    $region15: #{tpu_custom_call.1} parent=1 // pred_check_branch
      %1186 = sbr.rel (0) target = $region17
    $region16: #{tpu_custom_call.1} parent=1 // pred_region
      %s1188 = ssub.s32 1024, 1024
      %1189 = vsyncadd [#allocation3], %s1188
      %s1190 = sshll.u32 [#allocation2], 4
      %s1191 = int_to_ptr.vmem [resolvable:$true] %s1190
      %1196 = dma.vmem_to_hbm [thread:$0]  %s1191, 1024, %s3, [#allocation3], 128, 128, 8
    $region17: #{tpu_custom_call.1} parent=1 // pred_fallthru
      _
    // Predicated region
    $region18: #{tpu_custom_call.1} parent=1 // pred_check
      _
    $region19: #{tpu_custom_call.1} parent=1 // pred_check_branch
      %1198 = sbr.rel (0) target = $region21
    $region20: #{tpu_custom_call.1} parent=1 // pred_region
      %1199 = dma.done [#allocation3], 1024
    $region21: #{tpu_custom_call.1} parent=1 // pred_fallthru
      _
    %1200 = vsyncpa [#allocation3], 1

</llo_original>
